<compile_context>
chip_gen: v7x
topology: tpu7x:2x2x1
jax: 0.10.0
libtpu: 0.0.40
codegen_flags: <defaults>
</compile_context>

<pallas_src>
import math
from functools import partial

import jax
import jax.numpy as jnp
from jax.experimental import pallas as pl
from jax.experimental.pallas import tpu as pltpu

_LANES = 128
_SUBLANES = 8  # 32-bit native sublane count; scaled by packing factor per dtype.


def _generation_config():
    """Returns (block_bytes_target, vmem_limit_bytes, min_grid_blocks)."""
    try:
        kind = jax.devices()[0].device_kind.lower()
    except Exception:  # pragma: no cover - defensive default
        kind = ""
    if "v7" in kind:
        # 2 TCs/chip, 64 MiB physical VMEM: 8 MiB blocks, 4 bufs = 32 MiB live.
        return 8 * 1024 * 1024, 48 * 1024 * 1024, 2
    if "v5" in kind:
        # Single TC, 16 MiB scoped default: 4 MiB blocks, raise limit to 24 MiB.
        return 4 * 1024 * 1024, 24 * 1024 * 1024, 1
    # v6e / unknown: single TC, 128 MiB physical.
    return 8 * 1024 * 1024, 48 * 1024 * 1024, 1


def _scale_add_kernel(x_ref, o_ref):
    # Elementwise hot path: out = x * 2 + 1, computed in the input dtype.
    x = x_ref[...]
    two = jnp.asarray(2, dtype=x.dtype)
    one = jnp.asarray(1, dtype=x.dtype)
    o_ref[...] = x * two + one


def _choose_block_rows(rows, lanes, itemsize, block_bytes_target, min_blocks):
    # Dtype-native sublane multiple: 8 rows for 32-bit, 16 for 2-byte,
    # 32 for 1-byte packed dtypes.
    sub = _SUBLANES * max(1, 4 // itemsize)
    bytes_per_row = lanes * itemsize
    max_rows = max(sub, block_bytes_target // bytes_per_row)

    # Number of blocks implied by the VMEM budget, then enforce the minimum
    # grid size (>= 2 on v7x so both TensorCores get work).
    n_blocks = max(pl.cdiv(rows, max_rows), min_blocks)
    block_rows = pl.cdiv(rows, n_blocks)
    if block_rows < rows:
        # Round up to the native sublane multiple so every full block lowers
        # to unmasked full-width loads/stores.
        block_rows = ((block_rows + sub - 1) // sub) * sub
        block_rows = min(block_rows, rows)
    return block_rows


def _run_2d(x2d: jax.Array) -> jax.Array:
    rows, lanes = x2d.shape
    block_bytes, vmem_limit, min_blocks = _generation_config()
    block_rows = _choose_block_rows(
        rows, lanes, x2d.dtype.itemsize, block_bytes, min_blocks
    )
    grid = (pl.cdiv(rows, block_rows),)

    return pl.pallas_call(
        _scale_add_kernel,
        out_shape=jax.ShapeDtypeStruct(x2d.shape, x2d.dtype),
        grid=grid,
        in_specs=[pl.BlockSpec((block_rows, lanes), lambda i: (i, 0))],
        out_specs=pl.BlockSpec((block_rows, lanes), lambda i: (i, 0)),
        compiler_params=pltpu.CompilerParams(
            dimension_semantics=("parallel",),
            vmem_limit_bytes=vmem_limit,
        ),
    )(x2d)


@partial(jax.jit, static_argnames=())
def pt_module_forward(x: jax.Array) -> jax.Array:
    orig_shape = x.shape
    total = math.prod(orig_shape) if orig_shape else 1
    if total == 0:
        return x

    # Pad granularity: full vregs of the dtype-native tile (sub x 128).
    sub = _SUBLANES * max(1, 4 // x.dtype.itemsize)
    chunk = sub * _LANES

    if total % _LANES == 0:
        x2d = x.reshape(total // _LANES, _LANES)
        out2d = _run_2d(x2d)
        return out2d.reshape(orig_shape)

    # Awkward sizes: pad the flat view to a whole number of native tiles,
    # run the same lane-dense tiled path, then slice the padding back off.
    padded_total = ((total + chunk - 1) // chunk) * chunk
    flat = x.reshape(total)
    flat_padded = jnp.pad(flat, (0, padded_total - total))
    out2d = _run_2d(flat_padded.reshape(padded_total // _LANES, _LANES))
    return out2d.reshape(padded_total)[:total].reshape(orig_shape)


if __name__ == "__main__":
    key = jax.random.PRNGKey(0)
    x = jax.random.normal(key, (2, 4, 16, 16), dtype=jnp.float32)

    ref = x * 2 + 1

    out = pt_module_forward(x)
    out = jax.block_until_ready(out)

    assert out.shape == ref.shape and out.dtype == ref.dtype
    assert jnp.allclose(out, ref, atol=1e-6), "mismatch vs reference"

    print("KERNEL_OK")
</pallas_src>

<mosaic_0001>
module attributes {stable_mosaic.version = 11 : i64} {
  func.func @_scale_add_kernel(%arg0: i32, %arg1: memref<16x128xf32, #tpu.memory_space<vmem>>, %arg2: memref<16x128xf32, #tpu.memory_space<vmem>>) attributes {dimension_semantics = [#tpu.dimension_semantics<parallel>], iteration_bounds = array<i64: 1>, scalar_prefetch = 0 : i64, scratch_operands = 0 : i64, tpu.core_type = #tpu.core_type<tc>, window_params = [{transform_indices = @transform_0, window_bounds = array<i64: 16, 128>}, {transform_indices = @transform_1, window_bounds = array<i64: 16, 128>}]} {
    %c0 = arith.constant 0 : index
    %c0_0 = arith.constant 0 : index
    %0 = vector.load %arg1[%c0, %c0_0] : memref<16x128xf32, #tpu.memory_space<vmem>>, vector<16x128xf32>
    %cst = arith.constant 2.000000e+00 : f32
    %1 = vector.broadcast %cst : f32 to vector<16x128xf32>
    %2 = arith.mulf %0, %1 : vector<16x128xf32>
    %cst_1 = arith.constant 1.000000e+00 : f32
    %3 = vector.broadcast %cst_1 : f32 to vector<16x128xf32>
    %4 = arith.addf %2, %3 : vector<16x128xf32>
    %c0_2 = arith.constant 0 : index
    %c0_3 = arith.constant 0 : index
    %5 = vector.load %arg2[%c0_2, %c0_3] : memref<16x128xf32, #tpu.memory_space<vmem>>, vector<16x128xf32>
    tpu.vector_store %arg2[%c0_2, %c0_3], %4 {strides = array<i32>} : memref<16x128xf32, #tpu.memory_space<vmem>>, vector<16x128xf32>,
    return
  }
  func.func @transform_0(%arg0: i32) -> (i32, i32) {
    %c0_i32 = arith.constant 0 : i32
    %c0_i32_0 = arith.constant 0 : i32
    return %arg0, %c0_i32 : i32, i32
  }
  func.func @transform_1(%arg0: i32) -> (i32, i32) {
    %c0_i32 = arith.constant 0 : i32
    %c0_i32_0 = arith.constant 0 : i32
    return %arg0, %c0_i32 : i32, i32
  }
}

</mosaic_0001>

<llo_original>
// kernel: pt_module_forward.1
$region0: #{pt_module_forward.1}
  #allocation0 [shape = 'u32[]', space=smem, size = 0x4, offset = 0x4, fixed_abs, tag = 'smem constant byte address 0x4 - core index']
  #allocation1 [shape = 'u32[144,128]{1,0:T(1,128)}', space=vmem, size = 0x12000, scoped, tag = 'internal scratch']
  %s0 = inlined_call_operand.vmem [shape: f32[16,128], index: 0, kind: input, shape index: {}]
  %s1 = inlined_call_operand.vmem [shape: f32[16,128], index: 1, kind: output, shape index: {}]
  %s2 = sld [smem:[#allocation0]]
  $region14: #{pt_module_forward.1} parent=0
    _
  %s4 = ssub.s32 1, %s2
  %s5 = scalar_select 0, %s4, %s2
  // Predicated region
  $region2: #{pt_module_forward.1} parent=0 // pred_check
    _
  $region3: #{pt_module_forward.1} parent=0 // pred_check_branch
    %7 = sbr.rel (0) target = $region5
  $region4: #{pt_module_forward.1} parent=0 // pred_region
    _
  $region5: #{pt_module_forward.1} parent=0 // pred_fallthru
    _
  %v8 = vld [vmem:[%s0] sm:$0xff]
  %v9 = vld [vmem:[%s0 + $0x8] sm:$0xff]
  %v10 = vmul.f32 %v8, 2.0
  %v11 = vmul.f32 %v9, 2.0
  %v12 = vadd.f32 %v10, 1.0
  %v13 = vadd.f32 %v11, 1.0
  %14 = vst [vmem:[%s1] sm:$0xff] %v12
  %15 = vst [vmem:[%s1 + $0x8] sm:$0xff] %v13
  // Predicated region
  $region6: #{pt_module_forward.1} parent=0 // pred_check
    _
  $region7: #{pt_module_forward.1} parent=0 // pred_check_branch
    %17 = sbr.rel (0) target = $region9
  $region8: #{pt_module_forward.1} parent=0 // pred_region
    _
  $region9: #{pt_module_forward.1} parent=0 // pred_fallthru
    _
  // Predicated region
  $region10: #{pt_module_forward.1} parent=0 // pred_check
    _
  $region11: #{pt_module_forward.1} parent=0 // pred_check_branch
    %19 = sbr.rel (0) target = $region13
  $region12: #{pt_module_forward.1} parent=0 // pred_region
    _
  $region13: #{pt_module_forward.1} parent=0 // pred_fallthru
    _

</llo_original>
